<compile_context>
chip_gen: v7x
topology: tpu7x:2x2x1
jax: 0.10.0
libtpu: 0.0.40
codegen_flags: <defaults>
</compile_context>

<pallas_src>
import math

import jax
import jax.numpy as jnp
import numpy as np
from jax.experimental import pallas as pl
from jax.experimental.pallas import tpu as pltpu

# ----------------------------- config (small, synthetic) -----------------------------
BATCH = 2
SEQ = 8
HIDDEN = 32
NUM_HEADS = 4
HEAD_DIM = HIDDEN // NUM_HEADS
INTERMEDIATE = 64
TOKENS = BATCH * SEQ
LN_EPS = 1e-12
NEG_INF = -1e9  # additive mask value for cross-batch attention pairs
VEC_W = max(3 * HIDDEN, INTERMEDIATE)  # width of the packed vector slab


# ----------------------------- in-kernel helpers -----------------------------
def _gelu_exact(x):
    # BERT ACT2FN['gelu']: x * 0.5 * (1 + erf(x / sqrt(2)))  (kept in f32)
    return 0.5 * x * (1.0 + jax.lax.erf(x * (1.0 / math.sqrt(2.0))))


def _layernorm(x, gamma, beta):
    # PyTorch/BERT LayerNorm: biased variance over last dim, eps inside rsqrt (f32).
    mu = jnp.mean(x, axis=-1, keepdims=True)
    xc = x - mu
    var = jnp.mean(xc * xc, axis=-1, keepdims=True)
    return xc * jax.lax.rsqrt(var + LN_EPS) * gamma + beta


# ----------------------------- Pallas kernel -----------------------------
def cross_layer_kernel(
    x_ref, mask_ref,
    wqkv_ref, wo_ref, wi_ref, wo2_ref,
    vec_ref,
    out_ref,
):
    x = x_ref[...]            # [T, H] f32 (flattened batch*seq)
    mask = mask_ref[...]      # [T, T] f32 additive (block-diagonal + key padding)

    # ---- packed vector params: static row slices of one [8, VEC_W] f32 slab ----
    bqkv = vec_ref[0:1, :]                    # [1, 3H]  (Q part pre-scaled by 1/sqrt(d))
    bi   = vec_ref[1:2, 0:INTERMEDIATE]       # [1, I]
    bo   = vec_ref[2:3, 0:HIDDEN]
    g1   = vec_ref[3:4, 0:HIDDEN]
    b1   = vec_ref[4:5, 0:HIDDEN]
    bo2  = vec_ref[5:6, 0:HIDDEN]
    g2   = vec_ref[6:7, 0:HIDDEN]
    b2   = vec_ref[7:8, 0:HIDDEN]

    # ---- fused QKV projection: one MXU matmul (bf16 in, f32 acc), bias in f32 ----
    xb = x.astype(jnp.bfloat16)
    qkv = jnp.dot(xb, wqkv_ref[...], preferred_element_type=jnp.float32) + bqkv
    qkv_bf = qkv.astype(jnp.bfloat16)         # single cast of the whole [T, 3H] tile
    # head-major layout: cols [h*3D, h*3D+3D) = q_h | k_h | v_h

    # ---- per-head scores, no explicit k.T (contract on dim 1 of both operands) ----
    scores = []
    for h in range(NUM_HEADS):                # static loop, NUM_HEADS small
        base = 3 * HEAD_DIM * h
        q = qkv_bf[:, base:base + HEAD_DIM]                       # [T, D] (pre-scaled)
        k = qkv_bf[:, base + HEAD_DIM:base + 2 * HEAD_DIM]        # [T, D]
        s = jax.lax.dot_general(q, k, (((1,), (1,)), ((), ())),
                                preferred_element_type=jnp.float32)  # [T, T]
        scores.append(s)

    # ---- batched softmax: stack head score tiles along sublanes -> one set of
    # reductions / exp / reciprocal for all heads ----
    s_all = jnp.concatenate(scores, axis=0)                        # [nh*T, T]
    s_all = s_all + jnp.concatenate([mask] * NUM_HEADS, axis=0)
    s_all = s_all - jnp.max(s_all, axis=-1, keepdims=True)
    p_all = jnp.exp(s_all)                                         # f32 softmax
    p_all = p_all * pl.reciprocal(jnp.sum(p_all, axis=-1, keepdims=True))
    p_bf = p_all.astype(jnp.bfloat16)                              # single cast

    # ---- per-head PV matmuls; lane-concat contexts into one [T, H] tile ----
    ctxs = []
    for h in range(NUM_HEADS):
        base = 3 * HEAD_DIM * h
        v = qkv_bf[:, base + 2 * HEAD_DIM:base + 3 * HEAD_DIM]     # [T, D]
        p = p_bf[h * TOKENS:(h + 1) * TOKENS, :]                   # [T, T]
        ctxs.append(jnp.dot(p, v, preferred_element_type=jnp.float32))  # [T, D]
    ctx = jnp.concatenate(ctxs, axis=-1)                           # [T, H]

    # ---- attention output: single dense + bias + residual + LayerNorm (f32) ----
    attn = jnp.dot(ctx.astype(jnp.bfloat16), wo_ref[...],
                   preferred_element_type=jnp.float32) + bo
    h1 = _layernorm(attn + x, g1, b1)

    # ---- feed-forward: dense -> exact GELU -> dense + residual + LayerNorm ----
    inter = jnp.dot(h1.astype(jnp.bfloat16), wi_ref[...],
                    preferred_element_type=jnp.float32) + bi
    inter = _gelu_exact(inter)
    ffn = jnp.dot(inter.astype(jnp.bfloat16), wo2_ref[...],
                  preferred_element_type=jnp.float32) + bo2
    out = _layernorm(ffn + h1, g2, b2)

    out_ref[...] = out.astype(out_ref.dtype)


# ----------------------------- wrapper -----------------------------
def _pack_params(params):
    """Host-side repacking: head-major fused QKV (Q pre-scaled), bf16 weights,
    and ONE f32 slab holding all small vector params."""
    inv_sqrt_d = 1.0 / math.sqrt(HEAD_DIM)

    # head-major fused QKV weight: [H, nh, 3D] with q|k|v contiguous per head
    wq = (params["wq"] * inv_sqrt_d).reshape(HIDDEN, NUM_HEADS, HEAD_DIM)
    wk = params["wk"].reshape(HIDDEN, NUM_HEADS, HEAD_DIM)
    wv = params["wv"].reshape(HIDDEN, NUM_HEADS, HEAD_DIM)
    wqkv = jnp.concatenate([wq, wk, wv], axis=-1).reshape(HIDDEN, 3 * HIDDEN)
    wqkv = wqkv.astype(jnp.bfloat16)

    bq = (params["bq"] * inv_sqrt_d).reshape(NUM_HEADS, HEAD_DIM)
    bk = params["bk"].reshape(NUM_HEADS, HEAD_DIM)
    bv = params["bv"].reshape(NUM_HEADS, HEAD_DIM)
    bqkv = jnp.concatenate([bq, bk, bv], axis=-1).reshape(1, 3 * HIDDEN)

    def pad_row(v):  # [1, n] -> [1, VEC_W]
        return jnp.pad(v.astype(jnp.float32), ((0, 0), (0, VEC_W - v.shape[1])))

    vec = jnp.concatenate(
        [pad_row(bqkv), pad_row(params["bi"]), pad_row(params["bo"]),
         pad_row(params["g1"]), pad_row(params["b1"]), pad_row(params["bo2"]),
         pad_row(params["g2"]), pad_row(params["b2"])],
        axis=0)                                                    # [8, VEC_W]

    return dict(
        wqkv=wqkv,
        wo=params["wo"].astype(jnp.bfloat16),
        wi=params["wi"].astype(jnp.bfloat16),
        wo2=params["wo2"].astype(jnp.bfloat16),
        vec=vec,
    )


def _build_full_mask(mask_4d):
    """[B,1,1,S] additive key mask -> [T,T] additive mask over flattened tokens.

    Cross-batch query/key pairs get NEG_INF so one attention matmul per head over
    the flattened batch is equivalent to per-batch attention (block-diagonal).
    Fine at T=16; at real sizes switch to a per-batch grid + in-kernel iota mask."""
    batch_ids = jnp.repeat(jnp.arange(BATCH), SEQ)                 # [T]
    same = batch_ids[:, None] == batch_ids[None, :]                # [T, T]
    key_mask = mask_4d.reshape(TOKENS).astype(jnp.float32)         # [T]
    return jnp.where(same, key_mask[None, :], jnp.float32(NEG_INF))


def cross_layer(x, mask_4d, params):
    """x: [B, S, H] f32.  mask_4d: [B, 1, 1, S] additive mask (BERT convention)."""
    B, S, H = x.shape
    x2d = x.reshape(B * S, H)
    mask_full = _build_full_mask(mask_4d)
    p = _pack_params(params)

    # Single invocation (no grid): every operand is a whole-array VMEM block.
    vmem = pl.BlockSpec(memory_space=pltpu.MemorySpace.VMEM)

    out2d = pl.pallas_call(
        cross_layer_kernel,
        out_shape=jax.ShapeDtypeStruct((B * S, H), x.dtype),
        in_specs=[vmem] * 7,
        out_specs=vmem,
    )(
        x2d, mask_full,
        p["wqkv"], p["wo"], p["wi"], p["wo2"],
        p["vec"],
    )
    return out2d.reshape(B, S, H)


# ----------------------------- pure-JAX reference (f32) -----------------------------
def cross_layer_ref(x, mask_4d, p):
    B, S, H = x.shape
    nh, d = NUM_HEADS, HEAD_DIM

    def split_heads(t):  # [B,S,H] -> [B,nh,S,d]
        return t.reshape(B, S, nh, d).transpose(0, 2, 1, 3)

    q = split_heads(x @ p["wq"] + p["bq"])
    k = split_heads(x @ p["wk"] + p["bk"])
    v = split_heads(x @ p["wv"] + p["bv"])
    scores = jnp.einsum("bhqd,bhkd->bhqk", q, k) / math.sqrt(d) + mask_4d
    probs = jax.nn.softmax(scores, axis=-1)
    ctx = jnp.einsum("bhqk,bhkd->bhqd", probs, v).transpose(0, 2, 1, 3).reshape(B, S, H)

    def ln(t, g, b):
        mu = jnp.mean(t, axis=-1, keepdims=True)
        var = jnp.mean((t - mu) ** 2, axis=-1, keepdims=True)
        return (t - mu) / jnp.sqrt(var + LN_EPS) * g + b

    attn_out = ln(ctx @ p["wo"] + p["bo"] + x, p["g1"], p["b1"])
    inter = jax.nn.gelu(attn_out @ p["wi"] + p["bi"], approximate=False)
    return ln(inter @ p["wo2"] + p["bo2"] + attn_out, p["g2"], p["b2"])


# ----------------------------- parameter init -----------------------------
def init_params(key):
    ks = jax.random.split(key, 8)
    s = 0.02
    return {
        "wq": s * jax.random.normal(ks[0], (HIDDEN, HIDDEN), jnp.float32),
        "bq": jnp.zeros((1, HIDDEN), jnp.float32),
        "wk": s * jax.random.normal(ks[1], (HIDDEN, HIDDEN), jnp.float32),
        "bk": jnp.zeros((1, HIDDEN), jnp.float32),
        "wv": s * jax.random.normal(ks[2], (HIDDEN, HIDDEN), jnp.float32),
        "bv": jnp.zeros((1, HIDDEN), jnp.float32),
        "wo": s * jax.random.normal(ks[3], (HIDDEN, HIDDEN), jnp.float32),
        "bo": s * jax.random.normal(ks[4], (1, HIDDEN), jnp.float32),
        "g1": jnp.ones((1, HIDDEN), jnp.float32),
        "b1": jnp.zeros((1, HIDDEN), jnp.float32),
        "wi": s * jax.random.normal(ks[5], (HIDDEN, INTERMEDIATE), jnp.float32),
        "bi": s * jax.random.normal(ks[6], (1, INTERMEDIATE), jnp.float32),
        "wo2": s * jax.random.normal(ks[7], (INTERMEDIATE, HIDDEN), jnp.float32),
        "bo2": jnp.zeros((1, HIDDEN), jnp.float32),
        "g2": jnp.ones((1, HIDDEN), jnp.float32),
        "b2": jnp.zeros((1, HIDDEN), jnp.float32),
    }


# ----------------------------- main -----------------------------
if __name__ == "__main__":
    key = jax.random.PRNGKey(0)
    kx, kp = jax.random.split(key)

    x = jax.random.normal(kx, (BATCH, SEQ, HIDDEN), jnp.float32)

    # BERT-style additive mask [B,1,1,S]: batch 1 has its last 2 tokens masked out.
    valid = jnp.ones((BATCH, SEQ), jnp.float32).at[1, -2:].set(0.0)
    mask_4d = (1.0 - valid)[:, None, None, :] * -10000.0

    params = init_params(kp)

    out = cross_layer(x, mask_4d, params)
    out = jax.block_until_ready(out)

    ref = cross_layer_ref(x, mask_4d, params)
    # bf16 MXU operands vs the f32 reference: widened tolerance.
    np.testing.assert_allclose(np.asarray(out), np.asarray(ref), rtol=2e-2, atol=2e-2)

    print("KERNEL_OK")
</pallas_src>

<mosaic_0001>
module attributes {stable_mosaic.version = 11 : i64} {
  func.func @cross_layer_kernel(%arg0: memref<16x32xf32, #tpu.memory_space<vmem>>, %arg1: memref<16x16xf32, #tpu.memory_space<vmem>>, %arg2: memref<32x96xbf16, #tpu.memory_space<vmem>>, %arg3: memref<32x32xbf16, #tpu.memory_space<vmem>>, %arg4: memref<32x64xbf16, #tpu.memory_space<vmem>>, %arg5: memref<64x32xbf16, #tpu.memory_space<vmem>>, %arg6: memref<8x96xf32, #tpu.memory_space<vmem>>, %arg7: memref<16x32xf32, #tpu.memory_space<vmem>>) attributes {dimension_semantics = [], scalar_prefetch = 0 : i64, scratch_operands = 0 : i64, tpu.core_type = #tpu.core_type<tc>} {
    %c0 = arith.constant 0 : index
    %c0_0 = arith.constant 0 : index
    %0 = vector.load %arg0[%c0, %c0_0] : memref<16x32xf32, #tpu.memory_space<vmem>>, vector<16x32xf32>
    %c0_1 = arith.constant 0 : index
    %c0_2 = arith.constant 0 : index
    %1 = vector.load %arg1[%c0_1, %c0_2] : memref<16x16xf32, #tpu.memory_space<vmem>>, vector<16x16xf32>
    %c0_3 = arith.constant 0 : index
    %c0_4 = arith.constant 0 : index
    %2 = vector.load %arg6[%c0_3, %c0_4] : memref<8x96xf32, #tpu.memory_space<vmem>>, vector<1x96xf32>
    %c1 = arith.constant 1 : index
    %c0_5 = arith.constant 0 : index
    %3 = vector.load %arg6[%c1, %c0_5] : memref<8x96xf32, #tpu.memory_space<vmem>>, vector<1x64xf32>
    %c2 = arith.constant 2 : index
    %c0_6 = arith.constant 0 : index
    %4 = vector.load %arg6[%c2, %c0_6] : memref<8x96xf32, #tpu.memory_space<vmem>>, vector<1x32xf32>
    %c3 = arith.constant 3 : index
    %c0_7 = arith.constant 0 : index
    %5 = vector.load %arg6[%c3, %c0_7] : memref<8x96xf32, #tpu.memory_space<vmem>>, vector<1x32xf32>
    %c4 = arith.constant 4 : index
    %c0_8 = arith.constant 0 : index
    %6 = vector.load %arg6[%c4, %c0_8] : memref<8x96xf32, #tpu.memory_space<vmem>>, vector<1x32xf32>
    %c5 = arith.constant 5 : index
    %c0_9 = arith.constant 0 : index
    %7 = vector.load %arg6[%c5, %c0_9] : memref<8x96xf32, #tpu.memory_space<vmem>>, vector<1x32xf32>
    %c6 = arith.constant 6 : index
    %c0_10 = arith.constant 0 : index
    %8 = vector.load %arg6[%c6, %c0_10] : memref<8x96xf32, #tpu.memory_space<vmem>>, vector<1x32xf32>
    %c7 = arith.constant 7 : index
    %c0_11 = arith.constant 0 : index
    %9 = vector.load %arg6[%c7, %c0_11] : memref<8x96xf32, #tpu.memory_space<vmem>>, vector<1x32xf32>
    %10 = arith.truncf %0 : vector<16x32xf32> to vector<16x32xbf16>
    %c0_12 = arith.constant 0 : index
    %c0_13 = arith.constant 0 : index
    %11 = vector.load %arg2[%c0_12, %c0_13] : memref<32x96xbf16, #tpu.memory_space<vmem>>, vector<32x96xbf16>
    %cst = arith.constant dense<0.000000e+00> : vector<16x96xf32>
    %12 = tpu.matmul %10, %11, %cst {dimension_numbers = #tpu.dot_dimension_numbers<[1], [0], [0], [1], [0, 0, 1, 1], [], []>} : vector<16x32xbf16>, vector<32x96xbf16>, vector<16x96xf32> -> vector<16x96xf32>
    %13 = vector.broadcast %2 : vector<1x96xf32> to vector<16x96xf32>
    %14 = arith.addf %12, %13 : vector<16x96xf32>
    %15 = arith.truncf %14 : vector<16x96xf32> to vector<16x96xbf16>
    %16 = vector.extract_strided_slice %15 {offsets = [0, 0], sizes = [16, 8], strides = [1, 1]} : vector<16x96xbf16> to vector<16x8xbf16>
    %17 = vector.extract_strided_slice %15 {offsets = [0, 8], sizes = [16, 8], strides = [1, 1]} : vector<16x96xbf16> to vector<16x8xbf16>
    %cst_14 = arith.constant dense<0.000000e+00> : vector<16x16xf32>
    %18 = tpu.matmul %16, %17, %cst_14 {dimension_numbers = #tpu.dot_dimension_numbers<[1], [1], [0], [0], [0, 0, 1, 0], [], []>} : vector<16x8xbf16>, vector<16x8xbf16>, vector<16x16xf32> -> vector<16x16xf32>
    %19 = vector.extract_strided_slice %15 {offsets = [0, 24], sizes = [16, 8], strides = [1, 1]} : vector<16x96xbf16> to vector<16x8xbf16>
    %20 = vector.extract_strided_slice %15 {offsets = [0, 32], sizes = [16, 8], strides = [1, 1]} : vector<16x96xbf16> to vector<16x8xbf16>
    %cst_15 = arith.constant dense<0.000000e+00> : vector<16x16xf32>
    %21 = tpu.matmul %19, %20, %cst_15 {dimension_numbers = #tpu.dot_dimension_numbers<[1], [1], [0], [0], [0, 0, 1, 0], [], []>} : vector<16x8xbf16>, vector<16x8xbf16>, vector<16x16xf32> -> vector<16x16xf32>
    %22 = vector.extract_strided_slice %15 {offsets = [0, 48], sizes = [16, 8], strides = [1, 1]} : vector<16x96xbf16> to vector<16x8xbf16>
    %23 = vector.extract_strided_slice %15 {offsets = [0, 56], sizes = [16, 8], strides = [1, 1]} : vector<16x96xbf16> to vector<16x8xbf16>
    %cst_16 = arith.constant dense<0.000000e+00> : vector<16x16xf32>
    %24 = tpu.matmul %22, %23, %cst_16 {dimension_numbers = #tpu.dot_dimension_numbers<[1], [1], [0], [0], [0, 0, 1, 0], [], []>} : vector<16x8xbf16>, vector<16x8xbf16>, vector<16x16xf32> -> vector<16x16xf32>
    %25 = vector.extract_strided_slice %15 {offsets = [0, 72], sizes = [16, 8], strides = [1, 1]} : vector<16x96xbf16> to vector<16x8xbf16>
    %26 = vector.extract_strided_slice %15 {offsets = [0, 80], sizes = [16, 8], strides = [1, 1]} : vector<16x96xbf16> to vector<16x8xbf16>
    %cst_17 = arith.constant dense<0.000000e+00> : vector<16x16xf32>
    %27 = tpu.matmul %25, %26, %cst_17 {dimension_numbers = #tpu.dot_dimension_numbers<[1], [1], [0], [0], [0, 0, 1, 0], [], []>} : vector<16x8xbf16>, vector<16x8xbf16>, vector<16x16xf32> -> vector<16x16xf32>
    %28 = tpu.concatenate %18, %21, %24, %27 in 0 : vector<16x16xf32>, vector<16x16xf32>, vector<16x16xf32>, vector<16x16xf32> -> vector<64x16xf32>
    %29 = tpu.concatenate %1, %1, %1, %1 in 0 : vector<16x16xf32>, vector<16x16xf32>, vector<16x16xf32>, vector<16x16xf32> -> vector<64x16xf32>
    %30 = arith.addf %28, %29 : vector<64x16xf32>
    %cst_18 = arith.constant dense<0xFF800000> : vector<64xf32>
    %31 = vector.multi_reduction <maximumf>, %30, %cst_18 [1] : vector<64x16xf32> to vector<64xf32>
    %32 = vector.shape_cast %31 : vector<64xf32> to vector<64x1xf32>
    %33 = vector.broadcast %32 : vector<64x1xf32> to vector<64x16xf32>
    %34 = arith.subf %30, %33 : vector<64x16xf32>
    %35 = math.exp %34 : vector<64x16xf32>
    %cst_19 = arith.constant dense<0.000000e+00> : vector<64xf32>
    %36 = vector.multi_reduction <add>, %35, %cst_19 [1] : vector<64x16xf32> to vector<64xf32>
    %37 = vector.shape_cast %36 : vector<64xf32> to vector<64x1xf32>
    %38 = tpu.reciprocal %37 : vector<64x1xf32> -> vector<64x1xf32>
    %39 = vector.broadcast %38 : vector<64x1xf32> to vector<64x16xf32>
    %40 = arith.mulf %35, %39 : vector<64x16xf32>
    %41 = arith.truncf %40 : vector<64x16xf32> to vector<64x16xbf16>
    %42 = vector.extract_strided_slice %15 {offsets = [0, 16], sizes = [16, 8], strides = [1, 1]} : vector<16x96xbf16> to vector<16x8xbf16>
    %43 = vector.extract_strided_slice %41 {offsets = [0, 0], sizes = [16, 16], strides = [1, 1]} : vector<64x16xbf16> to vector<16x16xbf16>
    %cst_20 = arith.constant dense<0.000000e+00> : vector<16x8xf32>
    %44 = tpu.matmul %43, %42, %cst_20 {dimension_numbers = #tpu.dot_dimension_numbers<[1], [0], [0], [1], [0, 0, 1, 1], [], []>} : vector<16x16xbf16>, vector<16x8xbf16>, vector<16x8xf32> -> vector<16x8xf32>
    %45 = vector.extract_strided_slice %15 {offsets = [0, 40], sizes = [16, 8], strides = [1, 1]} : vector<16x96xbf16> to vector<16x8xbf16>
    %46 = vector.extract_strided_slice %41 {offsets = [16, 0], sizes = [16, 16], strides = [1, 1]} : vector<64x16xbf16> to vector<16x16xbf16>
    %cst_21 = arith.constant dense<0.000000e+00> : vector<16x8xf32>
    %47 = tpu.matmul %46, %45, %cst_21 {dimension_numbers = #tpu.dot_dimension_numbers<[1], [0], [0], [1], [0, 0, 1, 1], [], []>} : vector<16x16xbf16>, vector<16x8xbf16>, vector<16x8xf32> -> vector<16x8xf32>
    %48 = vector.extract_strided_slice %15 {offsets = [0, 64], sizes = [16, 8], strides = [1, 1]} : vector<16x96xbf16> to vector<16x8xbf16>
    %49 = vector.extract_strided_slice %41 {offsets = [32, 0], sizes = [16, 16], strides = [1, 1]} : vector<64x16xbf16> to vector<16x16xbf16>
    %cst_22 = arith.constant dense<0.000000e+00> : vector<16x8xf32>
    %50 = tpu.matmul %49, %48, %cst_22 {dimension_numbers = #tpu.dot_dimension_numbers<[1], [0], [0], [1], [0, 0, 1, 1], [], []>} : vector<16x16xbf16>, vector<16x8xbf16>, vector<16x8xf32> -> vector<16x8xf32>
    %51 = vector.extract_strided_slice %15 {offsets = [0, 88], sizes = [16, 8], strides = [1, 1]} : vector<16x96xbf16> to vector<16x8xbf16>
    %52 = vector.extract_strided_slice %41 {offsets = [48, 0], sizes = [16, 16], strides = [1, 1]} : vector<64x16xbf16> to vector<16x16xbf16>
    %cst_23 = arith.constant dense<0.000000e+00> : vector<16x8xf32>
    %53 = tpu.matmul %52, %51, %cst_23 {dimension_numbers = #tpu.dot_dimension_numbers<[1], [0], [0], [1], [0, 0, 1, 1], [], []>} : vector<16x16xbf16>, vector<16x8xbf16>, vector<16x8xf32> -> vector<16x8xf32>
    %54 = tpu.concatenate %44, %47, %50, %53 in 1 : vector<16x8xf32>, vector<16x8xf32>, vector<16x8xf32>, vector<16x8xf32> -> vector<16x32xf32>
    %55 = arith.truncf %54 : vector<16x32xf32> to vector<16x32xbf16>
    %c0_24 = arith.constant 0 : index
    %c0_25 = arith.constant 0 : index
    %56 = vector.load %arg3[%c0_24, %c0_25] : memref<32x32xbf16, #tpu.memory_space<vmem>>, vector<32x32xbf16>
    %cst_26 = arith.constant dense<0.000000e+00> : vector<16x32xf32>
    %57 = tpu.matmul %55, %56, %cst_26 {dimension_numbers = #tpu.dot_dimension_numbers<[1], [0], [0], [1], [0, 0, 1, 1], [], []>} : vector<16x32xbf16>, vector<32x32xbf16>, vector<16x32xf32> -> vector<16x32xf32>
    %58 = vector.broadcast %4 : vector<1x32xf32> to vector<16x32xf32>
    %59 = arith.addf %57, %58 : vector<16x32xf32>
    %60 = arith.addf %59, %0 : vector<16x32xf32>
    %cst_27 = arith.constant dense<0.000000e+00> : vector<16xf32>
    %61 = vector.multi_reduction <add>, %60, %cst_27 [1] : vector<16x32xf32> to vector<16xf32>
    %62 = vector.shape_cast %61 : vector<16xf32> to vector<16x1xf32>
    %cst_28 = arith.constant 3.200000e+01 : f32
    %63 = vector.broadcast %cst_28 : f32 to vector<16x1xf32>
    %64 = arith.divf %62, %63 : vector<16x1xf32>
    %65 = vector.broadcast %64 : vector<16x1xf32> to vector<16x32xf32>
    %66 = arith.subf %60, %65 : vector<16x32xf32>
    %67 = arith.mulf %66, %66 : vector<16x32xf32>
    %cst_29 = arith.constant dense<0.000000e+00> : vector<16xf32>
    %68 = vector.multi_reduction <add>, %67, %cst_29 [1] : vector<16x32xf32> to vector<16xf32>
    %69 = vector.shape_cast %68 : vector<16xf32> to vector<16x1xf32>
    %cst_30 = arith.constant 3.200000e+01 : f32
    %70 = vector.broadcast %cst_30 : f32 to vector<16x1xf32>
    %71 = arith.divf %69, %70 : vector<16x1xf32>
    %cst_31 = arith.constant 9.99999996E-13 : f32
    %72 = vector.broadcast %cst_31 : f32 to vector<16x1xf32>
    %73 = arith.addf %71, %72 : vector<16x1xf32>
    %74 = math.rsqrt %73 : vector<16x1xf32>
    %75 = vector.broadcast %74 : vector<16x1xf32> to vector<16x32xf32>
    %76 = arith.mulf %66, %75 : vector<16x32xf32>
    %77 = vector.broadcast %5 : vector<1x32xf32> to vector<16x32xf32>
    %78 = arith.mulf %76, %77 : vector<16x32xf32>
    %79 = vector.broadcast %6 : vector<1x32xf32> to vector<16x32xf32>
    %80 = arith.addf %78, %79 : vector<16x32xf32>
    %81 = arith.truncf %80 : vector<16x32xf32> to vector<16x32xbf16>
    %c0_32 = arith.constant 0 : index
    %c0_33 = arith.constant 0 : index
    %82 = vector.load %arg4[%c0_32, %c0_33] : memref<32x64xbf16, #tpu.memory_space<vmem>>, vector<32x64xbf16>
    %cst_34 = arith.constant dense<0.000000e+00> : vector<16x64xf32>
    %83 = tpu.matmul %81, %82, %cst_34 {dimension_numbers = #tpu.dot_dimension_numbers<[1], [0], [0], [1], [0, 0, 1, 1], [], []>} : vector<16x32xbf16>, vector<32x64xbf16>, vector<16x64xf32> -> vector<16x64xf32>
    %84 = vector.broadcast %3 : vector<1x64xf32> to vector<16x64xf32>
    %85 = arith.addf %83, %84 : vector<16x64xf32>
    %cst_35 = arith.constant 5.000000e-01 : f32
    %86 = vector.broadcast %cst_35 : f32 to vector<16x64xf32>
    %87 = arith.mulf %86, %85 : vector<16x64xf32>
    %cst_36 = arith.constant 0.707106769 : f32
    %88 = vector.broadcast %cst_36 : f32 to vector<16x64xf32>
    %89 = arith.mulf %85, %88 : vector<16x64xf32>
    %90 = math.erf %89 : vector<16x64xf32>
    %cst_37 = arith.constant 1.000000e+00 : f32
    %91 = vector.broadcast %cst_37 : f32 to vector<16x64xf32>
    %92 = arith.addf %91, %90 : vector<16x64xf32>
    %93 = arith.mulf %87, %92 : vector<16x64xf32>
    %94 = arith.truncf %93 : vector<16x64xf32> to vector<16x64xbf16>
    %c0_38 = arith.constant 0 : index
    %c0_39 = arith.constant 0 : index
    %95 = vector.load %arg5[%c0_38, %c0_39] : memref<64x32xbf16, #tpu.memory_space<vmem>>, vector<64x32xbf16>
    %cst_40 = arith.constant dense<0.000000e+00> : vector<16x32xf32>
    %96 = tpu.matmul %94, %95, %cst_40 {dimension_numbers = #tpu.dot_dimension_numbers<[1], [0], [0], [1], [0, 0, 1, 1], [], []>} : vector<16x64xbf16>, vector<64x32xbf16>, vector<16x32xf32> -> vector<16x32xf32>
    %97 = vector.broadcast %7 : vector<1x32xf32> to vector<16x32xf32>
    %98 = arith.addf %96, %97 : vector<16x32xf32>
    %99 = arith.addf %98, %80 : vector<16x32xf32>
    %cst_41 = arith.constant dense<0.000000e+00> : vector<16xf32>
    %100 = vector.multi_reduction <add>, %99, %cst_41 [1] : vector<16x32xf32> to vector<16xf32>
    %101 = vector.shape_cast %100 : vector<16xf32> to vector<16x1xf32>
    %cst_42 = arith.constant 3.200000e+01 : f32
    %102 = vector.broadcast %cst_42 : f32 to vector<16x1xf32>
    %103 = arith.divf %101, %102 : vector<16x1xf32>
    %104 = vector.broadcast %103 : vector<16x1xf32> to vector<16x32xf32>
    %105 = arith.subf %99, %104 : vector<16x32xf32>
    %106 = arith.mulf %105, %105 : vector<16x32xf32>
    %cst_43 = arith.constant dense<0.000000e+00> : vector<16xf32>
    %107 = vector.multi_reduction <add>, %106, %cst_43 [1] : vector<16x32xf32> to vector<16xf32>
    %108 = vector.shape_cast %107 : vector<16xf32> to vector<16x1xf32>
    %cst_44 = arith.constant 3.200000e+01 : f32
    %109 = vector.broadcast %cst_44 : f32 to vector<16x1xf32>
    %110 = arith.divf %108, %109 : vector<16x1xf32>
    %cst_45 = arith.constant 9.99999996E-13 : f32
    %111 = vector.broadcast %cst_45 : f32 to vector<16x1xf32>
    %112 = arith.addf %110, %111 : vector<16x1xf32>
    %113 = math.rsqrt %112 : vector<16x1xf32>
    %114 = vector.broadcast %113 : vector<16x1xf32> to vector<16x32xf32>
    %115 = arith.mulf %105, %114 : vector<16x32xf32>
    %116 = vector.broadcast %8 : vector<1x32xf32> to vector<16x32xf32>
    %117 = arith.mulf %115, %116 : vector<16x32xf32>
    %118 = vector.broadcast %9 : vector<1x32xf32> to vector<16x32xf32>
    %119 = arith.addf %117, %118 : vector<16x32xf32>
    %c0_46 = arith.constant 0 : index
    %c0_47 = arith.constant 0 : index
    %120 = vector.load %arg7[%c0_46, %c0_47] : memref<16x32xf32, #tpu.memory_space<vmem>>, vector<16x32xf32>
    tpu.vector_store %arg7[%c0_46, %c0_47], %119 {strides = array<i32>} : memref<16x32xf32, #tpu.memory_space<vmem>>, vector<16x32xf32>,
    return
  }
}

</mosaic_0001>

<llo_original>
// kernel: tpu_custom_call.1
$region0: #{tpu_custom_call.1}
  #allocation0 [shape = 'u32[]', space=smem, size = 0x4, offset = 0x4, fixed_abs, tag = 'smem constant byte address 0x4 - core index']
  #allocation1 [shape = 'u32[144,128]{1,0:T(1,128)}', space=vmem, size = 0x12000, scoped, tag = 'internal scratch']
  %s0 = inlined_call_operand.vmem [shape: f32[16,32], index: 0, kind: input, shape index: {}]
  %s1 = inlined_call_operand.vmem [shape: f32[16,16], index: 1, kind: input, shape index: {}]
  %s2 = inlined_call_operand.vmem [shape: bf16[32,96], index: 2, kind: input, shape index: {}]
  %s3 = inlined_call_operand.hbm [shape: bf16[32,32], index: 3, kind: input, shape index: {}]
  %s4 = inlined_call_operand.hbm [shape: bf16[32,64], index: 4, kind: input, shape index: {}]
  %s5 = inlined_call_operand.vmem [shape: bf16[64,32], index: 5, kind: input, shape index: {}]
  %s6 = inlined_call_operand.hbm [shape: f32[8,96], index: 6, kind: input, shape index: {}]
  %s7 = inlined_call_operand.hbm [shape: f32[16,32], index: 7, kind: output, shape index: {}]
  %s8 = sld [smem:[#allocation0]]
  $region50: #{tpu_custom_call.1} parent=0
    _
  %s10 = ssub.s32 1, %s8
  %s11 = scalar_select 0, %s10, %s8
  $region1: #{tpu_custom_call.1} parent=0
    #allocation2 [shape = 'u8[8192]{0}', space=vmem, size = 0x2000, scoped, tag = 'input window, operand 3, single buffered']
    #allocation3 [shape = 's32[1]{0}', space=sflag, size = 0x4, scoped, tag = 'scoped memory for tpu_custom_call.1']
    #allocation4 [shape = 's32[1]{0}', space=sflag, size = 0x4, scoped, tag = 'scoped memory for tpu_custom_call.1']
    #allocation5 [shape = 'u8[8192]{0}', space=vmem, size = 0x2000, scoped, tag = 'input window, operand 4, single buffered']
    #allocation6 [shape = 's32[1]{0}', space=sflag, size = 0x4, scoped, tag = 'scoped memory for tpu_custom_call.1']
    #allocation7 [shape = 'u8[4096]{0}', space=vmem, size = 0x1000, scoped, tag = 'input window, operand 6, single buffered']
    #allocation8 [shape = 'u8[8192]{0}', space=vmem, size = 0x2000, scoped, tag = 'output window, operand 0, single buffered']
    %12 = vsyncpa [#allocation3], 0
    %13 = vsyncpa [#allocation6], 0
    %14 = vsyncpa [#allocation4], 0
    // Predicated region
    $region2: #{tpu_custom_call.1} parent=1 // pred_check
      _
    $region3: #{tpu_custom_call.1} parent=1 // pred_check_branch
      %16 = sbr.rel (0) target = $region5
    $region4: #{tpu_custom_call.1} parent=1 // pred_region
      _
    $region5: #{tpu_custom_call.1} parent=1 // pred_fallthru
      _
    // Predicated region
    $region6: #{tpu_custom_call.1} parent=1 // pred_check
      _
    $region7: #{tpu_custom_call.1} parent=1 // pred_check_branch
      %18 = sbr.rel (0) target = $region9
    $region8: #{tpu_custom_call.1} parent=1 // pred_region
      _
    $region9: #{tpu_custom_call.1} parent=1 // pred_fallthru
      _
    // Predicated region
    $region10: #{tpu_custom_call.1} parent=1 // pred_check
      _
    $region11: #{tpu_custom_call.1} parent=1 // pred_check_branch
      %20 = sbr.rel (0) target = $region13
    $region12: #{tpu_custom_call.1} parent=1 // pred_region
      _
    $region13: #{tpu_custom_call.1} parent=1 // pred_fallthru
      _
    // Predicated region
    $region14: #{tpu_custom_call.1} parent=1 // pred_check
      _
    $region15: #{tpu_custom_call.1} parent=1 // pred_check_branch
      %22 = sbr.rel (0) target = $region17
    $region16: #{tpu_custom_call.1} parent=1 // pred_region
      %s24 = ssub.s32 256, 256
      %25 = vsyncadd [#allocation3], %s24
      %s26 = sshll.u32 [#allocation2], 4
      %s27 = int_to_ptr.vmem [resolvable:$true] %s26
      %32 = dma.hbm_to_vmem [thread:$0]  %s3, 256, %s27, [#allocation3], 64, 64, 4
    $region17: #{tpu_custom_call.1} parent=1 // pred_fallthru
      _
    // Predicated region
    $region18: #{tpu_custom_call.1} parent=1 // pred_check
      _
    $region19: #{tpu_custom_call.1} parent=1 // pred_check_branch
      %34 = sbr.rel (0) target = $region21
    $region20: #{tpu_custom_call.1} parent=1 // pred_region
      %s36 = ssub.s32 256, 256
      %37 = vsyncadd [#allocation6], %s36
      %s38 = sshll.u32 [#allocation5], 4
      %s39 = int_to_ptr.vmem [resolvable:$true] %s38
      %44 = dma.hbm_to_vmem [thread:$0]  %s4, 256, %s39, [#allocation6], 64, 64, 4
    $region21: #{tpu_custom_call.1} parent=1 // pred_fallthru
      _
    // Predicated region
    $region22: #{tpu_custom_call.1} parent=1 // pred_check
      _
    $region23: #{tpu_custom_call.1} parent=1 // pred_check_branch
      %46 = sbr.rel (0) target = $region25
    $region24: #{tpu_custom_call.1} parent=1 // pred_region
      _
    $region25: #{tpu_custom_call.1} parent=1 // pred_fallthru
      _
    // Predicated region
    $region26: #{tpu_custom_call.1} parent=1 // pred_check
      _
    $region27: #{tpu_custom_call.1} parent=1 // pred_check_branch
      %48 = sbr.rel (0) target = $region29
    $region28: #{tpu_custom_call.1} parent=1 // pred_region
      %s50 = ssub.s32 128, 128
      %51 = vsyncadd [#allocation6], %s50
      %s53 = sshll.u32 [#allocation7], 4
      %s54 = int_to_ptr.vmem [resolvable:$true] %s53
      %56 = dma.hbm_to_vmem [thread:$0]  %s6, 128, %s54, [#allocation6]
    $region29: #{tpu_custom_call.1} parent=1 // pred_fallthru
      _
    // Predicated region
    $region30: #{tpu_custom_call.1} parent=1 // pred_check
      _
    $region31: #{tpu_custom_call.1} parent=1 // pred_check_branch
      %58 = sbr.rel (0) target = $region33
    $region32: #{tpu_custom_call.1} parent=1 // pred_region
      %59 = dma.done [#allocation3], 256
    $region33: #{tpu_custom_call.1} parent=1 // pred_fallthru
      _
    // Predicated region
    $region34: #{tpu_custom_call.1} parent=1 // pred_check
      _
    $region35: #{tpu_custom_call.1} parent=1 // pred_check_branch
      %61 = sbr.rel (0) target = $region37
    $region36: #{tpu_custom_call.1} parent=1 // pred_region
      %62 = dma.done [#allocation6], 256
    $region37: #{tpu_custom_call.1} parent=1 // pred_fallthru
      _
    // Predicated region
    $region38: #{tpu_custom_call.1} parent=1 // pred_check
      _
    $region39: #{tpu_custom_call.1} parent=1 // pred_check_branch
      %64 = sbr.rel (0) target = $region41
    $region40: #{tpu_custom_call.1} parent=1 // pred_region
      %65 = dma.done [#allocation6], 128
    $region41: #{tpu_custom_call.1} parent=1 // pred_fallthru
      _
    %v67 = vld [vmem:[%s0] sm:$0xff]
    %v68 = vld [vmem:[%s0 + $0x8] sm:$0xff]
    %v69 = vld [vmem:[%s1] sm:$0xff]
    %v70 = vld [vmem:[%s1 + $0x8] sm:$0xff]
    %v71 = vld [vmem:[#allocation7] sm:$0x1]
    %v72 = vld [vmem:[#allocation7 + $0x1] sm:$0x1]
    %v73 = vld [vmem:[#allocation7 + $0x2] sm:$0x1]
    %v74 = vld [vmem:[#allocation7 + $0x3] sm:$0x1]
    %v75 = vld [vmem:[#allocation7 + $0x4] sm:$0x1]
    %v76 = vld [vmem:[#allocation7 + $0x5] sm:$0x1]
    %v77 = vld [vmem:[#allocation7 + $0x6] sm:$0x1]
    %v78 = vld [vmem:[#allocation7 + $0x7] sm:$0x1]
    %v79 = vpack.c.bf16 %v68, %v67
    %v80 = vld [vmem:[%s2] sm:$0xf]
    %v81 = vld [vmem:[%s2 + $0x4] sm:$0xf]
    %v82 = vld [vmem:[%s2 + $0x8] sm:$0xf]
    %v83 = vld [vmem:[%s2 + $0xc] sm:$0xf]
    %v84 = vlaneseq
    %v85 = vshrl.u32 %v84, 7
    %v86 = vsub.s32 0, %v85
    %v87 = vrot.slane %v71, %v86
    %v92 = vunpack.c.l.b16 %v80
    %v93 = vunpack.c.l.b16 %v81
    %v94 = vunpack.c.l.b16 %v82
    %v95 = vunpack.c.l.b16 %v83
    %v96 = vpack.c.b16 %v93, %v92
    %v97 = vpack.c.b16 %v95, %v94
    %vm100 = vcmask 261120
    %v102 = vsel %vm100, %v79, 0
    %104 = vmatprep.subr.bf16.mxu0 0
    %105 = vmatpush1.bf16.msra.mxu0 %v96
    %106 = vmatprep.subr.bf16.mxu0 0
    %107 = vmatpush1.bf16.msra.mxu0 %v97
    %108 = vmatprep.subr.bf16.mxu0 0
    %109 = vmatpush1.bf16.msra.mxu0 0
    %110 = vmatprep.subr.bf16.mxu0 0
    %111 = vmatpush1.bf16.msra.mxu0 0
    %112 = vmatprep.subr.bf16.mxu0 0
    %113 = vmatpush1.bf16.msra.mxu0 0
    %114 = vmatprep.subr.bf16.mxu0 0
    %115 = vmatpush1.bf16.msra.mxu0 0
    %116 = vmatprep.subr.bf16.mxu0 0
    %117 = vmatpush1.bf16.msra.mxu0 0
    %118 = vmatprep.subr.bf16.mxu0 0
    %119 = vmatpush1.bf16.msra.mxu0 0
    %120 = vmatprep.subr.bf16.mxu0 0
    %121 = vmatpush1.bf16.msra.mxu0 0
    %122 = vmatprep.subr.bf16.mxu0 0
    %123 = vmatpush1.bf16.msra.mxu0 0
    %124 = vmatprep.subr.bf16.mxu0 0
    %125 = vmatpush1.bf16.msra.mxu0 0
    %126 = vmatprep.subr.bf16.mxu0 0
    %127 = vmatpush1.bf16.msra.mxu0 0
    %128 = vmatprep.subr.bf16.mxu0 0
    %129 = vmatpush1.bf16.msra.mxu0 0
    %130 = vmatprep.subr.bf16.mxu0 0
    %131 = vmatpush1.bf16.msra.mxu0 0
    %132 = vmatprep.subr.bf16.mxu0 0
    %133 = vmatpush1.bf16.msra.mxu0 0
    %134 = vmatprep.subr.bf16.mxu0 0
    %135 = vmatpush1.bf16.msra.mxu0 0
    %136 = vmatprep.mubr.bf16.mxu0 0
    %137 = vmatmul.mubr.bf16.gmra.mrb[0].mxu0 %v102
    %v138 = vpop.f32.mrb[0].mxu0
    %v139 = vadd.f32 %v87, %v138
    %v140 = vpop.f32.mrb[0].mxu0
    %v141 = vpop.f32.mrb[0].mxu0
    %v142 = vadd.f32 %v87, %v141
    %v143 = vpop.f32.mrb[0].mxu0
    %144 = vdwg.mxu0
    %v145 = vpack.c.bf16 %v142, %v139
    %147 = vrot.lane.b32.xlu0 %v145, 120
    %v148 = vpop.permute.xlu0 %147
    %vm149 = vcmask 64512
    %v151 = vsel %vm149, %v145, 0
    %v154 = vsel %vm149, %v148, 0
    %156 = vmatprep.subr.bf16.mxu0 0
    %157 = vmatpush1.bf16.xpose.msra.mxu0 %v154
    %158 = vmatprep.subr.bf16.mxu0 0
    %159 = vmatpush1.bf16.xpose.msra.mxu0 0
    %160 = vmatprep.subr.bf16.mxu0 0
    %161 = vmatpush1.bf16.xpose.msra.mxu0 0
    %162 = vmatprep.subr.bf16.mxu0 0
    %163 = vmatpush1.bf16.xpose.msra.mxu0 0
    %164 = vmatprep.subr.bf16.mxu0 0
    %165 = vmatpush1.bf16.xpose.msra.mxu0 0
    %166 = vmatprep.subr.bf16.mxu0 0
    %167 = vmatpush1.bf16.xpose.msra.mxu0 0
    %168 = vmatprep.subr.bf16.mxu0 0
    %169 = vmatpush1.bf16.xpose.msra.mxu0 0
    %170 = vmatprep.subr.bf16.mxu0 0
    %171 = vmatpush1.bf16.xpose.msra.mxu0 0
    %172 = vmatprep.subr.bf16.mxu0 0
    %173 = vmatpush1.bf16.xpose.msra.mxu0 0
    %174 = vmatprep.subr.bf16.mxu0 0
    %175 = vmatpush1.bf16.xpose.msra.mxu0 0
    %176 = vmatprep.subr.bf16.mxu0 0
    %177 = vmatpush1.bf16.xpose.msra.mxu0 0
    %178 = vmatprep.subr.bf16.mxu0 0
    %179 = vmatpush1.bf16.xpose.msra.mxu0 0
    %180 = vmatprep.subr.bf16.mxu0 0
    %181 = vmatpush1.bf16.xpose.msra.mxu0 0
    %182 = vmatprep.subr.bf16.mxu0 0
    %183 = vmatpush1.bf16.xpose.msra.mxu0 0
    %184 = vmatprep.subr.bf16.mxu0 0
    %185 = vmatpush1.bf16.xpose.msra.mxu0 0
    %186 = vmatprep.subr.bf16.mxu0 0
    %187 = vmatpush1.bf16.xpose.msra.mxu0 0
    %188 = vmatprep.mubr.bf16.mxu0 0
    %189 = vmatmul.mubr.bf16.gmra.mrb[0].mxu0 %v151
    %v190 = vpop.f32.mrb[0].mxu0
    %v191 = vadd.f32 0.0, %v190
    %v192 = vpop.f32.mrb[0].mxu0
    %v193 = vpop.f32.mrb[0].mxu0
    %v194 = vadd.f32 0.0, %v193
    %v195 = vpop.f32.mrb[0].mxu0
    %196 = vdwg.mxu0
    %197 = vrot.lane.b32.xlu0 %v145, 104
    %v198 = vpop.permute.xlu0 %197
    %199 = vrot.lane.b32.xlu0 %v145, 96
    %v200 = vpop.permute.xlu0 %199
    %v202 = vsel %vm149, %v198, 0
    %v205 = vsel %vm149, %v200, 0
    %207 = vmatprep.subr.bf16.mxu0 0
    %208 = vmatpush1.bf16.xpose.msra.mxu0 %v205
    %209 = vmatprep.subr.bf16.mxu0 0
    %210 = vmatpush1.bf16.xpose.msra.mxu0 0
    %211 = vmatprep.subr.bf16.mxu0 0
    %212 = vmatpush1.bf16.xpose.msra.mxu0 0
    %213 = vmatprep.subr.bf16.mxu0 0
    %214 = vmatpush1.bf16.xpose.msra.mxu0 0
    %215 = vmatprep.subr.bf16.mxu0 0
    %216 = vmatpush1.bf16.xpose.msra.mxu0 0
    %217 = vmatprep.subr.bf16.mxu0 0
    %218 = vmatpush1.bf16.xpose.msra.mxu0 0
    %219 = vmatprep.subr.bf16.mxu0 0
    %220 = vmatpush1.bf16.xpose.msra.mxu0 0
    %221 = vmatprep.subr.bf16.mxu0 0
    %222 = vmatpush1.bf16.xpose.msra.mxu0 0
    %223 = vmatprep.subr.bf16.mxu0 0
    %224 = vmatpush1.bf16.xpose.msra.mxu0 0
    %225 = vmatprep.subr.bf16.mxu0 0
    %226 = vmatpush1.bf16.xpose.msra.mxu0 0
    %227 = vmatprep.subr.bf16.mxu0 0
    %228 = vmatpush1.bf16.xpose.msra.mxu0 0
    %229 = vmatprep.subr.bf16.mxu0 0
    %230 = vmatpush1.bf16.xpose.msra.mxu0 0
    %231 = vmatprep.subr.bf16.mxu0 0
    %232 = vmatpush1.bf16.xpose.msra.mxu0 0
    %233 = vmatprep.subr.bf16.mxu0 0
    %234 = vmatpush1.bf16.xpose.msra.mxu0 0
    %235 = vmatprep.subr.bf16.mxu0 0
    %236 = vmatpush1.bf16.xpose.msra.mxu0 0
    %237 = vmatprep.subr.bf16.mxu0 0
    %238 = vmatpush1.bf16.xpose.msra.mxu0 0
    %239 = vmatprep.mubr.bf16.mxu0 0
    %240 = vmatmul.mubr.bf16.gmra.mrb[0].mxu0 %v202
    %v241 = vpop.f32.mrb[0].mxu0
    %v242 = vadd.f32 0.0, %v241
    %v243 = vpop.f32.mrb[0].mxu0
    %v244 = vpop.f32.mrb[0].mxu0
    %v245 = vadd.f32 0.0, %v244
    %v246 = vpop.f32.mrb[0].mxu0
    %247 = vdwg.mxu0
    %248 = vrot.lane.b32.xlu0 %v145, 80
    %v249 = vpop.permute.xlu0 %248
    %250 = vrot.lane.b32.xlu0 %v145, 72
    %v251 = vpop.permute.xlu0 %250
    %v253 = vsel %vm149, %v249, 0
    %v256 = vsel %vm149, %v251, 0
    %258 = vmatprep.subr.bf16.mxu0 0
    %259 = vmatpush1.bf16.xpose.msra.mxu0 %v256
    %260 = vmatprep.subr.bf16.mxu0 0
    %261 = vmatpush1.bf16.xpose.msra.mxu0 0
    %262 = vmatprep.subr.bf16.mxu0 0
    %263 = vmatpush1.bf16.xpose.msra.mxu0 0
    %264 = vmatprep.subr.bf16.mxu0 0
    %265 = vmatpush1.bf16.xpose.msra.mxu0 0
    %266 = vmatprep.subr.bf16.mxu0 0
    %267 = vmatpush1.bf16.xpose.msra.mxu0 0
    %268 = vmatprep.subr.bf16.mxu0 0
    %269 = vmatpush1.bf16.xpose.msra.mxu0 0
    %270 = vmatprep.subr.bf16.mxu0 0
    %271 = vmatpush1.bf16.xpose.msra.mxu0 0
    %272 = vmatprep.subr.bf16.mxu0 0
    %273 = vmatpush1.bf16.xpose.msra.mxu0 0
    %274 = vmatprep.subr.bf16.mxu0 0
    %275 = vmatpush1.bf16.xpose.msra.mxu0 0
    %276 = vmatprep.subr.bf16.mxu0 0
    %277 = vmatpush1.bf16.xpose.msra.mxu0 0
    %278 = vmatprep.subr.bf16.mxu0 0
    %279 = vmatpush1.bf16.xpose.msra.mxu0 0
    %280 = vmatprep.subr.bf16.mxu0 0
    %281 = vmatpush1.bf16.xpose.msra.mxu0 0
    %282 = vmatprep.subr.bf16.mxu0 0
    %283 = vmatpush1.bf16.xpose.msra.mxu0 0
    %284 = vmatprep.subr.bf16.mxu0 0
    %285 = vmatpush1.bf16.xpose.msra.mxu0 0
    %286 = vmatprep.subr.bf16.mxu0 0
    %287 = vmatpush1.bf16.xpose.msra.mxu0 0
    %288 = vmatprep.subr.bf16.mxu0 0
    %289 = vmatpush1.bf16.xpose.msra.mxu0 0
    %290 = vmatprep.mubr.bf16.mxu0 0
    %291 = vmatmul.mubr.bf16.gmra.mrb[0].mxu0 %v253
    %v292 = vpop.f32.mrb[0].mxu0
    %v293 = vadd.f32 0.0, %v292
    %v294 = vpop.f32.mrb[0].mxu0
    %v295 = vpop.f32.mrb[0].mxu0
    %v296 = vadd.f32 0.0, %v295
    %v297 = vpop.f32.mrb[0].mxu0
    %298 = vdwg.mxu0
    %299 = vrot.lane.b32.xlu0 %v145, 56
    %v300 = vpop.permute.xlu0 %299
    %301 = vrot.lane.b32.xlu0 %v145, 48
    %v302 = vpop.permute.xlu0 %301
    %v304 = vsel %vm149, %v300, 0
    %v307 = vsel %vm149, %v302, 0
    %309 = vmatprep.subr.bf16.mxu0 0
    %310 = vmatpush1.bf16.xpose.msra.mxu0 %v307
    %311 = vmatprep.subr.bf16.mxu0 0
    %312 = vmatpush1.bf16.xpose.msra.mxu0 0
    %313 = vmatprep.subr.bf16.mxu0 0
    %314 = vmatpush1.bf16.xpose.msra.mxu0 0
    %315 = vmatprep.subr.bf16.mxu0 0
    %316 = vmatpush1.bf16.xpose.msra.mxu0 0
    %317 = vmatprep.subr.bf16.mxu0 0
    %318 = vmatpush1.bf16.xpose.msra.mxu0 0
    %319 = vmatprep.subr.bf16.mxu0 0
    %320 = vmatpush1.bf16.xpose.msra.mxu0 0
    %321 = vmatprep.subr.bf16.mxu0 0
    %322 = vmatpush1.bf16.xpose.msra.mxu0 0
    %323 = vmatprep.subr.bf16.mxu0 0
    %324 = vmatpush1.bf16.xpose.msra.mxu0 0
    %325 = vmatprep.subr.bf16.mxu0 0
    %326 = vmatpush1.bf16.xpose.msra.mxu0 0
    %327 = vmatprep.subr.bf16.mxu0 0
    %328 = vmatpush1.bf16.xpose.msra.mxu0 0
    %329 = vmatprep.subr.bf16.mxu0 0
    %330 = vmatpush1.bf16.xpose.msra.mxu0 0
    %331 = vmatprep.subr.bf16.mxu0 0
    %332 = vmatpush1.bf16.xpose.msra.mxu0 0
    %333 = vmatprep.subr.bf16.mxu0 0
    %334 = vmatpush1.bf16.xpose.msra.mxu0 0
    %335 = vmatprep.subr.bf16.mxu0 0
    %336 = vmatpush1.bf16.xpose.msra.mxu0 0
    %337 = vmatprep.subr.bf16.mxu0 0
    %338 = vmatpush1.bf16.xpose.msra.mxu0 0
    %339 = vmatprep.subr.bf16.mxu0 0
    %340 = vmatpush1.bf16.xpose.msra.mxu0 0
    %341 = vmatprep.mubr.bf16.mxu0 0
    %342 = vmatmul.mubr.bf16.gmra.mrb[0].mxu0 %v304
    %v343 = vpop.f32.mrb[0].mxu0
    %v344 = vadd.f32 0.0, %v343
    %v345 = vpop.f32.mrb[0].mxu0
    %v346 = vpop.f32.mrb[0].mxu0
    %v347 = vadd.f32 0.0, %v346
    %v348 = vpop.f32.mrb[0].mxu0
    %349 = vdwg.mxu0
    %v350 = vadd.f32 %v191, %v69
    %v351 = vadd.f32 %v194, %v70
    %v352 = vadd.f32 %v242, %v69
    %v353 = vadd.f32 %v245, %v70
    %v354 = vadd.f32 %v293, %v69
    %v355 = vadd.f32 %v296, %v70
    %v356 = vadd.f32 %v344, %v69
    %v357 = vadd.f32 %v347, %v70
    %vm358 = vcmask 130048
    %v359 = vsel %vm358, %v350, -inf
    %360 = vmax.xlane.f32.xlu0 %v359
    %v361 = vpop.xlane.xlu0 %360
    %v362 = vsel %vm358, %v351, -inf
    %363 = vmax.xlane.f32.xlu0 %v362
    %v364 = vpop.xlane.xlu0 %363
    %v365 = vsel %vm358, %v352, -inf
    %366 = vmax.xlane.f32.xlu0 %v365
    %v367 = vpop.xlane.xlu0 %366
    %v368 = vsel %vm358, %v353, -inf
    %369 = vmax.xlane.f32.xlu0 %v368
    %v370 = vpop.xlane.xlu0 %369
    %v371 = vsel %vm358, %v354, -inf
    %372 = vmax.xlane.f32.xlu0 %v371
    %v373 = vpop.xlane.xlu0 %372
    %v374 = vsel %vm358, %v355, -inf
    %375 = vmax.xlane.f32.xlu0 %v374
    %v376 = vpop.xlane.xlu0 %375
    %v377 = vsel %vm358, %v356, -inf
    %378 = vmax.xlane.f32.xlu0 %v377
    %v379 = vpop.xlane.xlu0 %378
    %v380 = vsel %vm358, %v357, -inf
    %381 = vmax.xlane.f32.xlu0 %v380
    %v382 = vpop.xlane.xlu0 %381
    %v383 = vsub.f32 %v350, %v361
    %v384 = vsub.f32 %v351, %v364
    %v385 = vsub.f32 %v352, %v367
    %v386 = vsub.f32 %v353, %v370
    %v387 = vsub.f32 %v354, %v373
    %v388 = vsub.f32 %v355, %v376
    %v389 = vsub.f32 %v356, %v379
    %v390 = vsub.f32 %v357, %v382
    %v391 = vmul.f32 %v383, 1.442695
    %v392 = vpow.pop %v391
    %v393 = vmul.f32 %v384, 1.442695
    %v394 = vpow.pop %v393
    %v395 = vmul.f32 %v385, 1.442695
    %v396 = vpow.pop %v395
    %v397 = vmul.f32 %v386, 1.442695
    %v398 = vpow.pop %v397
    %v399 = vmul.f32 %v387, 1.442695
    %v400 = vpow.pop %v399
    %v401 = vmul.f32 %v388, 1.442695
    %v402 = vpow.pop %v401
    %v403 = vmul.f32 %v389, 1.442695
    %v404 = vpow.pop %v403
    %v405 = vmul.f32 %v390, 1.442695
    %v406 = vpow.pop %v405
    %v407 = vsel %vm358, %v392, 0.0
    %408 = vadd.xlane.f32.xlu0 %v407
    %v409 = vpop.xlane.xlu0 %408
    %v410 = vsel %vm358, %v394, 0.0
    %411 = vadd.xlane.f32.xlu0 %v410
    %v412 = vpop.xlane.xlu0 %411
    %v413 = vsel %vm358, %v396, 0.0
    %414 = vadd.xlane.f32.xlu0 %v413
    %v415 = vpop.xlane.xlu0 %414
    %v416 = vsel %vm358, %v398, 0.0
    %417 = vadd.xlane.f32.xlu0 %v416
    %v418 = vpop.xlane.xlu0 %417
    %v419 = vsel %vm358, %v400, 0.0
    %420 = vadd.xlane.f32.xlu0 %v419
    %v421 = vpop.xlane.xlu0 %420
    %v422 = vsel %vm358, %v402, 0.0
    %423 = vadd.xlane.f32.xlu0 %v422
    %v424 = vpop.xlane.xlu0 %423
    %v425 = vsel %vm358, %v404, 0.0
    %426 = vadd.xlane.f32.xlu0 %v425
    %v427 = vpop.xlane.xlu0 %426
    %v428 = vsel %vm358, %v406, 0.0
    %429 = vadd.xlane.f32.xlu0 %v428
    %v430 = vpop.xlane.xlu0 %429
    %v431 = vrcp.pop %v409
    %v432 = vrcp.pop %v412
    %v433 = vrcp.pop %v415
    %v434 = vrcp.pop %v418
    %v435 = vrcp.pop %v421
    %v436 = vrcp.pop %v424
    %v437 = vrcp.pop %v427
    %v438 = vrcp.pop %v430
    %v439 = vmul.f32 %v392, %v431
    %v440 = vmul.f32 %v394, %v432
    %v441 = vmul.f32 %v396, %v433
    %v442 = vmul.f32 %v398, %v434
    %v443 = vmul.f32 %v400, %v435
    %v444 = vmul.f32 %v402, %v436
    %v445 = vmul.f32 %v404, %v437
    %v446 = vmul.f32 %v406, %v438
    %v447 = vpack.c.bf16 %v440, %v439
    %v448 = vpack.c.bf16 %v442, %v441
    %v449 = vpack.c.bf16 %v444, %v443
    %v450 = vpack.c.bf16 %v446, %v445
    %451 = vrot.lane.b32.xlu0 %v145, 112
    %v452 = vpop.permute.xlu0 %451
    %v455 = vsel %vm358, %v447, 0
    %457 = vmatprep.subr.bf16.mxu0 0
    %458 = vmatpush1.bf16.msra.mxu0 %v452
    %459 = vmatprep.subr.bf16.mxu0 0
    %460 = vmatpush1.bf16.msra.mxu0 0
    %461 = vmatprep.subr.bf16.mxu0 0
    %462 = vmatpush1.bf16.msra.mxu0 0
    %463 = vmatprep.subr.bf16.mxu0 0
    %464 = vmatpush1.bf16.msra.mxu0 0
    %465 = vmatprep.subr.bf16.mxu0 0
    %466 = vmatpush1.bf16.msra.mxu0 0
    %467 = vmatprep.subr.bf16.mxu0 0
    %468 = vmatpush1.bf16.msra.mxu0 0
    %469 = vmatprep.subr.bf16.mxu0 0
    %470 = vmatpush1.bf16.msra.mxu0 0
    %471 = vmatprep.subr.bf16.mxu0 0
    %472 = vmatpush1.bf16.msra.mxu0 0
    %473 = vmatprep.subr.bf16.mxu0 0
    %474 = vmatpush1.bf16.msra.mxu0 0
    %475 = vmatprep.subr.bf16.mxu0 0
    %476 = vmatpush1.bf16.msra.mxu0 0
    %477 = vmatprep.subr.bf16.mxu0 0
    %478 = vmatpush1.bf16.msra.mxu0 0
    %479 = vmatprep.subr.bf16.mxu0 0
    %480 = vmatpush1.bf16.msra.mxu0 0
    %481 = vmatprep.subr.bf16.mxu0 0
    %482 = vmatpush1.bf16.msra.mxu0 0
    %483 = vmatprep.subr.bf16.mxu0 0
    %484 = vmatpush1.bf16.msra.mxu0 0
    %485 = vmatprep.subr.bf16.mxu0 0
    %486 = vmatpush1.bf16.msra.mxu0 0
    %487 = vmatprep.subr.bf16.mxu0 0
    %488 = vmatpush1.bf16.msra.mxu0 0
    %489 = vmatprep.mubr.bf16.mxu0 0
    %490 = vmatmul.mubr.bf16.gmra.mrb[0].mxu0 %v455
    %v491 = vpop.f32.mrb[0].mxu0
    %v492 = vadd.f32 0.0, %v491
    %v493 = vpop.f32.mrb[0].mxu0
    %v494 = vpop.f32.mrb[0].mxu0
    %v495 = vadd.f32 0.0, %v494
    %v496 = vpop.f32.mrb[0].mxu0
    %497 = vdwg.mxu0
    %498 = vrot.lane.b32.xlu0 %v145, 88
    %v499 = vpop.permute.xlu0 %498
    %v502 = vsel %vm358, %v448, 0
    %504 = vmatprep.subr.bf16.mxu0 0
    %505 = vmatpush1.bf16.msra.mxu0 %v499
    %506 = vmatprep.subr.bf16.mxu0 0
    %507 = vmatpush1.bf16.msra.mxu0 0
    %508 = vmatprep.subr.bf16.mxu0 0
    %509 = vmatpush1.bf16.msra.mxu0 0
    %510 = vmatprep.subr.bf16.mxu0 0
    %511 = vmatpush1.bf16.msra.mxu0 0
    %512 = vmatprep.subr.bf16.mxu0 0
    %513 = vmatpush1.bf16.msra.mxu0 0
    %514 = vmatprep.subr.bf16.mxu0 0
    %515 = vmatpush1.bf16.msra.mxu0 0
    %516 = vmatprep.subr.bf16.mxu0 0
    %517 = vmatpush1.bf16.msra.mxu0 0
    %518 = vmatprep.subr.bf16.mxu0 0
    %519 = vmatpush1.bf16.msra.mxu0 0
    %520 = vmatprep.subr.bf16.mxu0 0
    %521 = vmatpush1.bf16.msra.mxu0 0
    %522 = vmatprep.subr.bf16.mxu0 0
    %523 = vmatpush1.bf16.msra.mxu0 0
    %524 = vmatprep.subr.bf16.mxu0 0
    %525 = vmatpush1.bf16.msra.mxu0 0
    %526 = vmatprep.subr.bf16.mxu0 0
    %527 = vmatpush1.bf16.msra.mxu0 0
    %528 = vmatprep.subr.bf16.mxu0 0
    %529 = vmatpush1.bf16.msra.mxu0 0
    %530 = vmatprep.subr.bf16.mxu0 0
    %531 = vmatpush1.bf16.msra.mxu0 0
    %532 = vmatprep.subr.bf16.mxu0 0
    %533 = vmatpush1.bf16.msra.mxu0 0
    %534 = vmatprep.subr.bf16.mxu0 0
    %535 = vmatpush1.bf16.msra.mxu0 0
    %536 = vmatprep.mubr.bf16.mxu0 0
    %537 = vmatmul.mubr.bf16.gmra.mrb[0].mxu0 %v502
    %v538 = vpop.f32.mrb[0].mxu0
    %v539 = vadd.f32 0.0, %v538
    %v540 = vpop.f32.mrb[0].mxu0
    %v541 = vpop.f32.mrb[0].mxu0
    %v542 = vadd.f32 0.0, %v541
    %v543 = vpop.f32.mrb[0].mxu0
    %544 = vdwg.mxu0
    %545 = vrot.lane.b32.xlu0 %v145, 64
    %v546 = vpop.permute.xlu0 %545
    %v549 = vsel %vm358, %v449, 0
    %551 = vmatprep.subr.bf16.mxu0 0
    %552 = vmatpush1.bf16.msra.mxu0 %v546
    %553 = vmatprep.subr.bf16.mxu0 0
    %554 = vmatpush1.bf16.msra.mxu0 0
    %555 = vmatprep.subr.bf16.mxu0 0
    %556 = vmatpush1.bf16.msra.mxu0 0
    %557 = vmatprep.subr.bf16.mxu0 0
    %558 = vmatpush1.bf16.msra.mxu0 0
    %559 = vmatprep.subr.bf16.mxu0 0
    %560 = vmatpush1.bf16.msra.mxu0 0
    %561 = vmatprep.subr.bf16.mxu0 0
    %562 = vmatpush1.bf16.msra.mxu0 0
    %563 = vmatprep.subr.bf16.mxu0 0
    %564 = vmatpush1.bf16.msra.mxu0 0
    %565 = vmatprep.subr.bf16.mxu0 0
    %566 = vmatpush1.bf16.msra.mxu0 0
    %567 = vmatprep.subr.bf16.mxu0 0
    %568 = vmatpush1.bf16.msra.mxu0 0
    %569 = vmatprep.subr.bf16.mxu0 0
    %570 = vmatpush1.bf16.msra.mxu0 0
    %571 = vmatprep.subr.bf16.mxu0 0
    %572 = vmatpush1.bf16.msra.mxu0 0
    %573 = vmatprep.subr.bf16.mxu0 0
    %574 = vmatpush1.bf16.msra.mxu0 0
    %575 = vmatprep.subr.bf16.mxu0 0
    %576 = vmatpush1.bf16.msra.mxu0 0
    %577 = vmatprep.subr.bf16.mxu0 0
    %578 = vmatpush1.bf16.msra.mxu0 0
    %579 = vmatprep.subr.bf16.mxu0 0
    %580 = vmatpush1.bf16.msra.mxu0 0
    %581 = vmatprep.subr.bf16.mxu0 0
    %582 = vmatpush1.bf16.msra.mxu0 0
    %583 = vmatprep.mubr.bf16.mxu0 0
    %584 = vmatmul.mubr.bf16.gmra.mrb[0].mxu0 %v549
    %v585 = vpop.f32.mrb[0].mxu0
    %v586 = vadd.f32 0.0, %v585
    %v587 = vpop.f32.mrb[0].mxu0
    %v588 = vpop.f32.mrb[0].mxu0
    %v589 = vadd.f32 0.0, %v588
    %v590 = vpop.f32.mrb[0].mxu0
    %591 = vdwg.mxu0
    %592 = vrot.lane.b32.xlu0 %v145, 40
    %v593 = vpop.permute.xlu0 %592
    %v596 = vsel %vm358, %v450, 0
    %598 = vmatprep.subr.bf16.mxu0 0
    %599 = vmatpush1.bf16.msra.mxu0 %v593
    %600 = vmatprep.subr.bf16.mxu0 0
    %601 = vmatpush1.bf16.msra.mxu0 0
    %602 = vmatprep.subr.bf16.mxu0 0
    %603 = vmatpush1.bf16.msra.mxu0 0
    %604 = vmatprep.subr.bf16.mxu0 0
    %605 = vmatpush1.bf16.msra.mxu0 0
    %606 = vmatprep.subr.bf16.mxu0 0
    %607 = vmatpush1.bf16.msra.mxu0 0
    %608 = vmatprep.subr.bf16.mxu0 0
    %609 = vmatpush1.bf16.msra.mxu0 0
    %610 = vmatprep.subr.bf16.mxu0 0
    %611 = vmatpush1.bf16.msra.mxu0 0
    %612 = vmatprep.subr.bf16.mxu0 0
    %613 = vmatpush1.bf16.msra.mxu0 0
    %614 = vmatprep.subr.bf16.mxu0 0
    %615 = vmatpush1.bf16.msra.mxu0 0
    %616 = vmatprep.subr.bf16.mxu0 0
    %617 = vmatpush1.bf16.msra.mxu0 0
    %618 = vmatprep.subr.bf16.mxu0 0
    %619 = vmatpush1.bf16.msra.mxu0 0
    %620 = vmatprep.subr.bf16.mxu0 0
    %621 = vmatpush1.bf16.msra.mxu0 0
    %622 = vmatprep.subr.bf16.mxu0 0
    %623 = vmatpush1.bf16.msra.mxu0 0
    %624 = vmatprep.subr.bf16.mxu0 0
    %625 = vmatpush1.bf16.msra.mxu0 0
    %626 = vmatprep.subr.bf16.mxu0 0
    %627 = vmatpush1.bf16.msra.mxu0 0
    %628 = vmatprep.subr.bf16.mxu0 0
    %629 = vmatpush1.bf16.msra.mxu0 0
    %630 = vmatprep.mubr.bf16.mxu0 0
    %631 = vmatmul.mubr.bf16.gmra.mrb[0].mxu0 %v596
    %v632 = vpop.f32.mrb[0].mxu0
    %v633 = vadd.f32 0.0, %v632
    %v634 = vpop.f32.mrb[0].mxu0
    %v635 = vpop.f32.mrb[0].mxu0
    %v636 = vadd.f32 0.0, %v635
    %v637 = vpop.f32.mrb[0].mxu0
    %638 = vdwg.mxu0
    %641 = vrot.lane.b32.xlu0 %v539, 8
    %v642 = vpop.permute.xlu0 %641
    %643 = vrot.lane.b32.xlu0 %v542, 8
    %v644 = vpop.permute.xlu0 %643
    %649 = vrot.lane.b32.xlu0 %v586, 16
    %v650 = vpop.permute.xlu0 %649
    %651 = vrot.lane.b32.xlu0 %v589, 16
    %v652 = vpop.permute.xlu0 %651
    %657 = vrot.lane.b32.xlu0 %v633, 24
    %v658 = vpop.permute.xlu0 %657
    %659 = vrot.lane.b32.xlu0 %v636, 24
    %v660 = vpop.permute.xlu0 %659
    %v663 = vsel %vm149, %v492, %v642
    %v664 = vsel %vm149, %v495, %v644
    %v665 = vsel %vm358, %v663, %v650
    %v666 = vsel %vm358, %v664, %v652
    %vm667 = vcmask 195584
    %v668 = vsel %vm667, %v665, %v658
    %v669 = vsel %vm667, %v666, %v660
    %v670 = vpack.c.bf16 %v669, %v668
    %v671 = vld [vmem:[#allocation2] sm:$0xf]
    %v672 = vld [vmem:[#allocation2 + $0x4] sm:$0xf]
    %v673 = vld [vmem:[#allocation2 + $0x8] sm:$0xf]
    %v674 = vld [vmem:[#allocation2 + $0xc] sm:$0xf]
    %v675 = vlaneseq
    %v676 = vshrl.u32 %v675, 7
    %v677 = vsub.s32 0, %v676
    %v678 = vrot.slane %v73, %v677
    %v683 = vunpack.c.l.b16 %v671
    %v684 = vunpack.c.l.b16 %v672
    %v685 = vunpack.c.l.b16 %v673
    %v686 = vunpack.c.l.b16 %v674
    %v687 = vpack.c.b16 %v684, %v683
    %v688 = vpack.c.b16 %v686, %v685
    %v692 = vsel %vm100, %v670, 0
    %694 = vmatprep.subr.bf16.mxu0 0
    %695 = vmatpush1.bf16.msra.mxu0 %v687
    %696 = vmatprep.subr.bf16.mxu0 0
    %697 = vmatpush1.bf16.msra.mxu0 %v688
    %698 = vmatprep.subr.bf16.mxu0 0
    %699 = vmatpush1.bf16.msra.mxu0 0
    %700 = vmatprep.subr.bf16.mxu0 0
    %701 = vmatpush1.bf16.msra.mxu0 0
    %702 = vmatprep.subr.bf16.mxu0 0
    %703 = vmatpush1.bf16.msra.mxu0 0
    %704 = vmatprep.subr.bf16.mxu0 0
    %705 = vmatpush1.bf16.msra.mxu0 0
    %706 = vmatprep.subr.bf16.mxu0 0
    %707 = vmatpush1.bf16.msra.mxu0 0
    %708 = vmatprep.subr.bf16.mxu0 0
    %709 = vmatpush1.bf16.msra.mxu0 0
    %710 = vmatprep.subr.bf16.mxu0 0
    %711 = vmatpush1.bf16.msra.mxu0 0
    %712 = vmatprep.subr.bf16.mxu0 0
    %713 = vmatpush1.bf16.msra.mxu0 0
    %714 = vmatprep.subr.bf16.mxu0 0
    %715 = vmatpush1.bf16.msra.mxu0 0
    %716 = vmatprep.subr.bf16.mxu0 0
    %717 = vmatpush1.bf16.msra.mxu0 0
    %718 = vmatprep.subr.bf16.mxu0 0
    %719 = vmatpush1.bf16.msra.mxu0 0
    %720 = vmatprep.subr.bf16.mxu0 0
    %721 = vmatpush1.bf16.msra.mxu0 0
    %722 = vmatprep.subr.bf16.mxu0 0
    %723 = vmatpush1.bf16.msra.mxu0 0
    %724 = vmatprep.subr.bf16.mxu0 0
    %725 = vmatpush1.bf16.msra.mxu0 0
    %726 = vmatprep.mubr.bf16.mxu0 0
    %727 = vmatmul.mubr.bf16.gmra.mrb[0].mxu0 %v692
    %v728 = vpop.f32.mrb[0].mxu0
    %v729 = vadd.f32 %v678, %v728
    %v730 = vpop.f32.mrb[0].mxu0
    %v731 = vpop.f32.mrb[0].mxu0
    %v732 = vadd.f32 %v678, %v731
    %v733 = vpop.f32.mrb[0].mxu0
    %734 = vdwg.mxu0
    %v735 = vadd.f32 %v729, %v67
    %v736 = vadd.f32 %v732, %v68
    %v737 = vsel %vm100, %v735, 0.0
    %738 = vadd.xlane.f32.xlu0 %v737
    %v739 = vpop.xlane.xlu0 %738
    %v740 = vsel %vm100, %v736, 0.0
    %741 = vadd.xlane.f32.xlu0 %v740
    %v742 = vpop.xlane.xlu0 %741
    %v743 = vrcp.pop 32.0
    %v744 = vmul.f32 %v739, %v743
    %v745 = vmul.f32 %v742, %v743
    %v746 = vsub.f32 %v735, %v744
    %v747 = vsub.f32 %v736, %v745
    %v748 = vmul.f32 %v746, %v746
    %v749 = vmul.f32 %v747, %v747
    %v750 = vsel %vm100, %v748, 0.0
    %751 = vadd.xlane.f32.xlu0 %v750
    %v752 = vpop.xlane.xlu0 %751
    %v753 = vsel %vm100, %v749, 0.0
    %754 = vadd.xlane.f32.xlu0 %v753
    %v755 = vpop.xlane.xlu0 %754
    %v756 = vmul.f32 %v752, %v743
    %v757 = vmul.f32 %v755, %v743
    %v758 = vadd.f32 %v756, 1e-12
    %v759 = vadd.f32 %v757, 1e-12
    %v760 = vrsqrt.pop %v758
    %v761 = vrsqrt.pop %v759
    %v762 = vmul.f32 %v746, %v760
    %v763 = vmul.f32 %v747, %v761
    %v764 = vlaneseq
    %v765 = vshrl.u32 %v764, 7
    %v766 = vsub.s32 0, %v765
    %v767 = vrot.slane %v74, %v766
    %v768 = vmul.f32 %v762, %v767
    %v769 = vmul.f32 %v763, %v767
    %v770 = vlaneseq
    %v771 = vshrl.u32 %v770, 7
    %v772 = vsub.s32 0, %v771
    %v773 = vrot.slane %v75, %v772
    %v774 = vadd.f32 %v768, %v773
    %v775 = vadd.f32 %v769, %v773
    %v776 = vpack.c.bf16 %v775, %v774
    %v777 = vld [vmem:[#allocation5] sm:$0xf]
    %v778 = vld [vmem:[#allocation5 + $0x4] sm:$0xf]
    %v779 = vld [vmem:[#allocation5 + $0x8] sm:$0xf]
    %v780 = vld [vmem:[#allocation5 + $0xc] sm:$0xf]
    %v781 = vlaneseq
    %v782 = vshrl.u32 %v781, 7
    %v783 = vsub.s32 0, %v782
    %v784 = vrot.slane %v72, %v783
    %v789 = vunpack.c.l.b16 %v777
    %v790 = vunpack.c.l.b16 %v778
    %v791 = vunpack.c.l.b16 %v779
    %v792 = vunpack.c.l.b16 %v780
    %v793 = vpack.c.b16 %v790, %v789
    %v794 = vpack.c.b16 %v792, %v791
    %v798 = vsel %vm100, %v776, 0
    %800 = vmatprep.subr.bf16.mxu0 0
    %801 = vmatpush1.bf16.msra.mxu0 %v793
    %802 = vmatprep.subr.bf16.mxu0 0
    %803 = vmatpush1.bf16.msra.mxu0 %v794
    %804 = vmatprep.subr.bf16.mxu0 0
    %805 = vmatpush1.bf16.msra.mxu0 0
    %806 = vmatprep.subr.bf16.mxu0 0
    %807 = vmatpush1.bf16.msra.mxu0 0
    %808 = vmatprep.subr.bf16.mxu0 0
    %809 = vmatpush1.bf16.msra.mxu0 0
    %810 = vmatprep.subr.bf16.mxu0 0
    %811 = vmatpush1.bf16.msra.mxu0 0
    %812 = vmatprep.subr.bf16.mxu0 0
    %813 = vmatpush1.bf16.msra.mxu0 0
    %814 = vmatprep.subr.bf16.mxu0 0
    %815 = vmatpush1.bf16.msra.mxu0 0
    %816 = vmatprep.subr.bf16.mxu0 0
    %817 = vmatpush1.bf16.msra.mxu0 0
    %818 = vmatprep.subr.bf16.mxu0 0
    %819 = vmatpush1.bf16.msra.mxu0 0
    %820 = vmatprep.subr.bf16.mxu0 0
    %821 = vmatpush1.bf16.msra.mxu0 0
    %822 = vmatprep.subr.bf16.mxu0 0
    %823 = vmatpush1.bf16.msra.mxu0 0
    %824 = vmatprep.subr.bf16.mxu0 0
    %825 = vmatpush1.bf16.msra.mxu0 0
    %826 = vmatprep.subr.bf16.mxu0 0
    %827 = vmatpush1.bf16.msra.mxu0 0
    %828 = vmatprep.subr.bf16.mxu0 0
    %829 = vmatpush1.bf16.msra.mxu0 0
    %830 = vmatprep.subr.bf16.mxu0 0
    %831 = vmatpush1.bf16.msra.mxu0 0
    %832 = vmatprep.mubr.bf16.mxu0 0
    %833 = vmatmul.mubr.bf16.gmra.mrb[0].mxu0 %v798
    %v834 = vpop.f32.mrb[0].mxu0
    %v835 = vadd.f32 %v784, %v834
    %v836 = vpop.f32.mrb[0].mxu0
    %v837 = vpop.f32.mrb[0].mxu0
    %v838 = vadd.f32 %v784, %v837
    %v839 = vpop.f32.mrb[0].mxu0
    %840 = vdwg.mxu0
    %v841 = vmul.f32 %v835, 0.5
    %v842 = vmul.f32 %v838, 0.5
    %v843 = vmul.f32 %v835, 0.70710677
    %v844 = vmul.f32 %v838, 0.70710677
    %v845 = verf.f32.pop %v843
    %v846 = verf.f32.pop %v844
    %v847 = vadd.f32 %v845, 1.0
    %v848 = vadd.f32 %v846, 1.0
    %v849 = vmul.f32 %v841, %v847
    %v850 = vmul.f32 %v842, %v848
    %v851 = vpack.c.bf16 %v850, %v849
    %v852 = vld [vmem:[%s5] sm:$0xf]
    %v853 = vld [vmem:[%s5 + $0x4] sm:$0xf]
    %v854 = vld [vmem:[%s5 + $0x8] sm:$0xf]
    %v855 = vld [vmem:[%s5 + $0xc] sm:$0xf]
    %v856 = vld [vmem:[%s5 + $0x10] sm:$0xf]
    %v857 = vld [vmem:[%s5 + $0x14] sm:$0xf]
    %v858 = vld [vmem:[%s5 + $0x18] sm:$0xf]
    %v859 = vld [vmem:[%s5 + $0x1c] sm:$0xf]
    %v860 = vlaneseq
    %v861 = vshrl.u32 %v860, 7
    %v862 = vsub.s32 0, %v861
    %v863 = vrot.slane %v76, %v862
    %v872 = vunpack.c.l.b16 %v852
    %v873 = vunpack.c.l.b16 %v853
    %v874 = vunpack.c.l.b16 %v854
    %v875 = vunpack.c.l.b16 %v855
    %v876 = vunpack.c.l.b16 %v856
    %v877 = vunpack.c.l.b16 %v857
    %v878 = vunpack.c.l.b16 %v858
    %v879 = vunpack.c.l.b16 %v859
    %v880 = vpack.c.b16 %v873, %v872
    %v881 = vpack.c.b16 %v875, %v874
    %v882 = vpack.c.b16 %v877, %v876
    %v883 = vpack.c.b16 %v879, %v878
    %vm888 = vcmask 523264
    %v890 = vsel %vm888, %v851, 0
    %892 = vmatprep.subr.bf16.mxu0 0
    %893 = vmatpush1.bf16.msra.mxu0 %v880
    %894 = vmatprep.subr.bf16.mxu0 0
    %895 = vmatpush1.bf16.msra.mxu0 %v881
    %896 = vmatprep.subr.bf16.mxu0 0
    %897 = vmatpush1.bf16.msra.mxu0 %v882
    %898 = vmatprep.subr.bf16.mxu0 0
    %899 = vmatpush1.bf16.msra.mxu0 %v883
    %900 = vmatprep.subr.bf16.mxu0 0
    %901 = vmatpush1.bf16.msra.mxu0 0
    %902 = vmatprep.subr.bf16.mxu0 0
    %903 = vmatpush1.bf16.msra.mxu0 0
    %904 = vmatprep.subr.bf16.mxu0 0
    %905 = vmatpush1.bf16.msra.mxu0 0
    %906 = vmatprep.subr.bf16.mxu0 0
    %907 = vmatpush1.bf16.msra.mxu0 0
    %908 = vmatprep.subr.bf16.mxu0 0
    %909 = vmatpush1.bf16.msra.mxu0 0
    %910 = vmatprep.subr.bf16.mxu0 0
    %911 = vmatpush1.bf16.msra.mxu0 0
    %912 = vmatprep.subr.bf16.mxu0 0
    %913 = vmatpush1.bf16.msra.mxu0 0
    %914 = vmatprep.subr.bf16.mxu0 0
    %915 = vmatpush1.bf16.msra.mxu0 0
    %916 = vmatprep.subr.bf16.mxu0 0
    %917 = vmatpush1.bf16.msra.mxu0 0
    %918 = vmatprep.subr.bf16.mxu0 0
    %919 = vmatpush1.bf16.msra.mxu0 0
    %920 = vmatprep.subr.bf16.mxu0 0
    %921 = vmatpush1.bf16.msra.mxu0 0
    %922 = vmatprep.subr.bf16.mxu0 0
    %923 = vmatpush1.bf16.msra.mxu0 0
    %924 = vmatprep.mubr.bf16.mxu0 0
    %925 = vmatmul.mubr.bf16.gmra.mrb[0].mxu0 %v890
    %v926 = vpop.f32.mrb[0].mxu0
    %v927 = vadd.f32 %v863, %v926
    %v928 = vpop.f32.mrb[0].mxu0
    %v929 = vpop.f32.mrb[0].mxu0
    %v930 = vadd.f32 %v863, %v929
    %v931 = vpop.f32.mrb[0].mxu0
    %932 = vdwg.mxu0
    %v933 = vadd.f32 %v927, %v774
    %v934 = vadd.f32 %v930, %v775
    %v935 = vsel %vm100, %v933, 0.0
    %936 = vadd.xlane.f32.xlu0 %v935
    %v937 = vpop.xlane.xlu0 %936
    %v938 = vsel %vm100, %v934, 0.0
    %939 = vadd.xlane.f32.xlu0 %v938
    %v940 = vpop.xlane.xlu0 %939
    %v941 = vmul.f32 %v937, %v743
    %v942 = vmul.f32 %v940, %v743
    %v943 = vsub.f32 %v933, %v941
    %v944 = vsub.f32 %v934, %v942
    %v945 = vmul.f32 %v943, %v943
    %v946 = vmul.f32 %v944, %v944
    %v947 = vsel %vm100, %v945, 0.0
    %948 = vadd.xlane.f32.xlu0 %v947
    %v949 = vpop.xlane.xlu0 %948
    %v950 = vsel %vm100, %v946, 0.0
    %951 = vadd.xlane.f32.xlu0 %v950
    %v952 = vpop.xlane.xlu0 %951
    %v953 = vmul.f32 %v949, %v743
    %v954 = vmul.f32 %v952, %v743
    %v955 = vadd.f32 %v953, 1e-12
    %v956 = vadd.f32 %v954, 1e-12
    %v957 = vrsqrt.pop %v955
    %v958 = vrsqrt.pop %v956
    %v959 = vmul.f32 %v943, %v957
    %v960 = vmul.f32 %v944, %v958
    %v961 = vlaneseq
    %v962 = vshrl.u32 %v961, 7
    %v963 = vsub.s32 0, %v962
    %v964 = vrot.slane %v77, %v963
    %v965 = vmul.f32 %v959, %v964
    %v966 = vmul.f32 %v960, %v964
    %v967 = vlaneseq
    %v968 = vshrl.u32 %v967, 7
    %v969 = vsub.s32 0, %v968
    %v970 = vrot.slane %v78, %v969
    %v971 = vadd.f32 %v965, %v970
    %v972 = vadd.f32 %v966, %v970
    %973 = vst.msk [vmem:[#allocation8] sm:$0xff] %vm100, %v971
    %974 = vst.msk [vmem:[#allocation8 + $0x8] sm:$0xff] %vm100, %v972
    // Predicated region
    $region42: #{tpu_custom_call.1} parent=1 // pred_check
      _
    $region43: #{tpu_custom_call.1} parent=1 // pred_check_branch
      %976 = sbr.rel (0) target = $region45
    $region44: #{tpu_custom_call.1} parent=1 // pred_region
      %s978 = ssub.s32 256, 256
      %979 = vsyncadd [#allocation4], %s978
      %s980 = sshll.u32 [#allocation8], 4
      %s981 = int_to_ptr.vmem [resolvable:$true] %s980
      %986 = dma.vmem_to_hbm [thread:$0]  %s981, 256, %s7, [#allocation4], 128, 128, 8
    $region45: #{tpu_custom_call.1} parent=1 // pred_fallthru
      _
    // Predicated region
    $region46: #{tpu_custom_call.1} parent=1 // pred_check
      _
    $region47: #{tpu_custom_call.1} parent=1 // pred_check_branch
      %988 = sbr.rel (0) target = $region49
    $region48: #{tpu_custom_call.1} parent=1 // pred_region
      %989 = dma.done [#allocation4], 256
    $region49: #{tpu_custom_call.1} parent=1 // pred_fallthru
      _
    %990 = vsyncpa [#allocation3], 1
    %991 = vsyncpa [#allocation6], 1
    %992 = vsyncpa [#allocation4], 1

</llo_original>
